<compile_context>
chip_gen: v7x
topology: tpu7x:2x2x1
jax: 0.10.0
libtpu: 0.0.40
codegen_flags: <defaults>
</compile_context>

<pallas_src>
import jax
import jax.numpy as jnp
from jax.experimental import pallas as pl
from jax.experimental.pallas import tpu as pltpu


_NEG_BIG = -1e30  # bias pad value for fake (padded) classes: exp() underflows to 0.


def _vmem_limit_bytes():
    """Scoped-VMEM request sized per TPU generation (v7x has only 64 MiB/TC)."""
    try:
        cap = pltpu.get_tpu_info().vmem_capacity_bytes
    except Exception:
        cap = 64 * 1024 * 1024  # assume the smallest (v7x) if the query is unavailable
    return int(min(cap * 3 // 4, 100 * 1024 * 1024))


def _pick_row_tile(n):
    # Prefer 256-aligned row tiles (keeps the 2x256x256 MXU of v6e/v7x full and stays
    # inside v7x's smaller VMEM); fall back to smaller divisors, else the full dim.
    for c in (256, 128, 64, 32, 16, 8):
        if n % c == 0:
            return c
    return n


def _pick_k_tile(n):
    # K (Ahat column) tile: lane axis must be a multiple of 128 or the full dim.
    if n % 128 != 0:
        return n
    for c in (4096, 2048, 1024, 512, 256, 128):
        if n % c == 0:
            return c
    return n


# ----------------------------------------------------------------------------- GCN layer


def _gcn_layer_kernel(ahat_ref, h_ref, w_ref, b_ref, out_ref, acc_ref):
    k = pl.program_id(1)

    @pl.when(k == 0)
    def _():
        acc_ref[...] = jnp.zeros_like(acc_ref)

    # (TM, TK) @ (TK, Fin): bf16 operands, f32 accumulation on the MXU.
    acc_ref[...] += jnp.dot(ahat_ref[...], h_ref[...],
                            preferred_element_type=jnp.float32)

    @pl.when(k == pl.num_programs(1) - 1)
    def _():
        # Small (TM, Fin) @ (Fin, Fout) weight matmul + bias + ReLU (finalize).
        z = jnp.dot(acc_ref[...], w_ref[...],
                    preferred_element_type=jnp.float32) + b_ref[...]
        out_ref[...] = jnp.maximum(z, 0.0).astype(out_ref.dtype)


def _gcn_layer(ahat, h, w_t, b_row, *, out_dtype=jnp.bfloat16):
    """relu((Ahat @ h) @ w_t + b_row)  ==  relu(Ahat @ (h @ W^T) + b)."""
    n = ahat.shape[0]
    fin, fout = w_t.shape
    tm = _pick_row_tile(n)
    tk = _pick_k_tile(n)
    grid = (n // tm, n // tk)

    cost = pl.CostEstimate(
        flops=2 * n * n * fin + 2 * n * fin * fout,
        transcendentals=0,
        bytes_accessed=(n * n * ahat.dtype.itemsize
                        + n * fin * h.dtype.itemsize
                        + fin * fout * 4 + fout * 4
                        + n * fout * jnp.dtype(out_dtype).itemsize),
    )

    return pl.pallas_call(
        _gcn_layer_kernel,
        out_shape=jax.ShapeDtypeStruct((n, fout), out_dtype),
        grid_spec=pltpu.PrefetchScalarGridSpec(
            num_scalar_prefetch=0,
            grid=grid,
            in_specs=[
                pl.BlockSpec((tm, tk), lambda i, k: (i, k)),     # Ahat row/col block
                pl.BlockSpec((tk, fin), lambda i, k: (k, 0)),    # activations (K block)
                pl.BlockSpec((fin, fout), lambda i, k: (0, 0)),  # W^T (resident)
                pl.BlockSpec((1, fout), lambda i, k: (0, 0)),    # bias row
            ],
            out_specs=pl.BlockSpec((tm, fout), lambda i, k: (i, 0)),
            scratch_shapes=[pltpu.VMEM((tm, fin), jnp.float32)],
        ),
        compiler_params=pltpu.CompilerParams(
            dimension_semantics=("parallel", "arbitrary"),
            vmem_limit_bytes=_vmem_limit_bytes(),
        ),
        cost_estimate=cost,
    )(ahat, h, w_t, b_row)


# ------------------------------------------------------------ final Linear + log_softmax


def _lin_logsoftmax_kernel(x1_ref, x2_ref, x3_ref,
                           w1_ref, w2_ref, w3_ref, b_ref, out_ref):
    # concat([x1, x2, x3]) @ Wlin^T  ==  x1@W1 + x2@W2 + x3@W3  (no in-kernel concat).
    logits = b_ref[...]
    logits = logits + jnp.dot(x1_ref[...].astype(jnp.float32), w1_ref[...],
                              preferred_element_type=jnp.float32)
    logits = logits + jnp.dot(x2_ref[...].astype(jnp.float32), w2_ref[...],
                              preferred_element_type=jnp.float32)
    logits = logits + jnp.dot(x3_ref[...].astype(jnp.float32), w3_ref[...],
                              preferred_element_type=jnp.float32)
    # Numerically stable log_softmax; padded classes carry a -1e30 bias -> exp == 0.
    m = jnp.max(logits, axis=-1, keepdims=True)
    z = logits - m
    lse = jnp.log(jnp.sum(jnp.exp(z), axis=-1, keepdims=True))
    out_ref[...] = z - lse


def _lin_logsoftmax(x1, x2, x3, w1, w2, w3, b_row):
    n, h = x1.shape
    cpad = w1.shape[1]
    tm = _pick_row_tile(n)
    grid = (n // tm,)

    cost = pl.CostEstimate(
        flops=3 * 2 * n * h * cpad + 6 * n * cpad,
        transcendentals=n * cpad + n,
        bytes_accessed=(3 * n * h * x1.dtype.itemsize
                        + 3 * h * cpad * 4 + cpad * 4 + n * cpad * 4),
    )

    return pl.pallas_call(
        _lin_logsoftmax_kernel,
        out_shape=jax.ShapeDtypeStruct((n, cpad), jnp.float32),
        grid_spec=pltpu.PrefetchScalarGridSpec(
            num_scalar_prefetch=0,
            grid=grid,
            in_specs=[
                pl.BlockSpec((tm, h), lambda i: (i, 0)),
                pl.BlockSpec((tm, h), lambda i: (i, 0)),
                pl.BlockSpec((tm, h), lambda i: (i, 0)),
                pl.BlockSpec((h, cpad), lambda i: (0, 0)),
                pl.BlockSpec((h, cpad), lambda i: (0, 0)),
                pl.BlockSpec((h, cpad), lambda i: (0, 0)),
                pl.BlockSpec((1, cpad), lambda i: (0, 0)),
            ],
            out_specs=pl.BlockSpec((tm, cpad), lambda i: (i, 0)),
        ),
        compiler_params=pltpu.CompilerParams(
            dimension_semantics=("parallel",),
            vmem_limit_bytes=_vmem_limit_bytes(),
        ),
        cost_estimate=cost,
    )(x1, x2, x3, w1, w2, w3, b_row)


# ---------------------------------------------------------------------------- glue / model


def gcn_norm_dense(edge_index, num_nodes, edge_weight=None):
    """Dense symmetric-normalized adjacency D^-1/2 (A+I) D^-1/2 (JAX scatter glue)."""
    # TODO(synk): real GraphSAINT subgraphs are sparse; a block-sparse Ahat with
    #             scalar-prefetched nonzero-block indices (skipping zero blocks in the
    #             Pallas grid) would turn the O(N^2) cost into O(nnz-blocks). Not done.
    row, col = edge_index[0], edge_index[1]
    if edge_weight is None:
        edge_weight = jnp.ones(row.shape[0], dtype=jnp.float32)
    loop = jnp.arange(num_nodes, dtype=row.dtype)
    row = jnp.concatenate([row, loop])
    col = jnp.concatenate([col, loop])
    ew = jnp.concatenate([edge_weight, jnp.ones(num_nodes, jnp.float32)])
    deg = jnp.zeros(num_nodes, jnp.float32).at[col].add(ew)
    dinv = jnp.where(deg > 0, jax.lax.rsqrt(deg), 0.0)
    norm = dinv[row] * ew * dinv[col]
    # message src(row) -> dst(col): out[dst] += norm * x[src]  =>  Ahat[dst, src]
    return jnp.zeros((num_nodes, num_nodes), jnp.float32).at[col, row].add(norm)


def init_params(key, num_node_features, hidden_channels, num_classes):
    ks = jax.random.split(key, 8)

    def glorot(k, out_dim, in_dim):
        scale = jnp.sqrt(6.0 / (in_dim + out_dim))
        return jax.random.uniform(k, (out_dim, in_dim), jnp.float32, -scale, scale)

    w1 = glorot(ks[0], hidden_channels, num_node_features)
    b1 = jnp.zeros((hidden_channels,), jnp.float32)
    w2 = glorot(ks[1], hidden_channels, hidden_channels)
    b2 = jnp.zeros((hidden_channels,), jnp.float32)
    w3 = glorot(ks[2], hidden_channels, hidden_channels)
    b3 = jnp.zeros((hidden_channels,), jnp.float32)
    wlin = glorot(ks[3], num_classes, 3 * hidden_channels)
    blin = 0.01 * jax.random.normal(ks[4], (num_classes,), jnp.float32)
    return (w1, b1, w2, b2, w3, b3, wlin, blin)


def saintn_forward(x, edge_index, params, num_classes):
    n = x.shape[0]
    w1, b1, w2, b2, w3, b3, wlin, blin = params
    h = w1.shape[0]

    # bf16 Ahat/activations halve the dominant N^2 HBM traffic and run the MXU at
    # native bf16 rate; all matmul accumulation stays f32 inside the kernels.
    ahat = gcn_norm_dense(edge_index, n).astype(jnp.bfloat16)
    xb = x.astype(jnp.bfloat16)

    # Pre-transpose weights once, wrapper-side (kernel operands stay lane-contiguous).
    w1t = jnp.asarray(w1, jnp.float32).T
    w2t = jnp.asarray(w2, jnp.float32).T
    w3t = jnp.asarray(w3, jnp.float32).T

    # Split the classifier weight into per-layer slices (kills the in-kernel concat)
    # and pad the class axis to 128 lanes for an unmasked, lane-dense output store.
    cpad = ((max(num_classes, 1) + 127) // 128) * 128
    pad_c = cpad - num_classes
    wlin_t = jnp.asarray(wlin, jnp.float32).T  # (3H, C)

    def _pad_cols(m):
        return jnp.pad(m, ((0, 0), (0, pad_c)))

    wl1 = _pad_cols(wlin_t[0:h])
    wl2 = _pad_cols(wlin_t[h:2 * h])
    wl3 = _pad_cols(wlin_t[2 * h:3 * h])
    bl = jnp.pad(blin.reshape(1, -1).astype(jnp.float32),
                 ((0, 0), (0, pad_c)), constant_values=_NEG_BIG)

    # F.dropout(..., training=False) == identity, so it is omitted.
    x1 = _gcn_layer(ahat, xb, w1t, b1.reshape(1, -1))
    x2 = _gcn_layer(ahat, x1, w2t, b2.reshape(1, -1))
    x3 = _gcn_layer(ahat, x2, w3t, b3.reshape(1, -1))

    out_padded = _lin_logsoftmax(x1, x2, x3, wl1, wl2, wl3, bl)
    return out_padded[:, :num_classes]


def saintn_reference(x, edge_index, params, num_classes):
    """Pure-JAX f32 reference of the same forward pass (for tolerance checking)."""
    ahat = gcn_norm_dense(edge_index, x.shape[0])
    w1, b1, w2, b2, w3, b3, wlin, blin = params

    def gcn(hh, w, b):
        return ahat @ (hh @ w.T) + b

    x1 = jax.nn.relu(gcn(x, w1, b1))
    x2 = jax.nn.relu(gcn(x1, w2, b2))
    x3 = jax.nn.relu(gcn(x2, w3, b3))
    logits = jnp.concatenate([x1, x2, x3], axis=-1) @ wlin.T + blin
    return jax.nn.log_softmax(logits, axis=-1)


if __name__ == "__main__":
    # Small deterministic setup: 16 nodes, 16 node features, hidden=32, 8 classes.
    N, F, H, C = 16, 16, 32, 8

    key = jax.random.PRNGKey(0)
    k_x, k_p = jax.random.split(key)
    x = jax.random.normal(k_x, (N, F), jnp.float32)

    # Deterministic ring graph, edges in both directions.
    src = jnp.arange(N, dtype=jnp.int32)
    dst = (src + 1) % N
    edge_index = jnp.stack(
        [jnp.concatenate([src, dst]), jnp.concatenate([dst, src])], axis=0
    )

    params = init_params(k_p, F, H, C)

    out = saintn_forward(x, edge_index, params, C)
    out = jax.block_until_ready(out)

    assert out.shape == (N, C)
    # log_softmax rows must exponentiate to probability distributions
    assert bool(jnp.allclose(jnp.sum(jnp.exp(out), axis=-1), 1.0, atol=1e-4))
    # bf16 inputs / f32 accumulation: validate against the f32 reference by tolerance.
    ref = saintn_reference(x, edge_index, params, C)
    assert bool(jnp.allclose(out, ref, atol=1e-1)), "mismatch vs f32 reference"
    print("KERNEL_OK")
</pallas_src>

<mosaic_0001>
module attributes {stable_mosaic.version = 11 : i64} {
  func.func @_gcn_layer_kernel(%arg0: i32, %arg1: i32, %arg2: memref<16x16xbf16, #tpu.memory_space<vmem>>, %arg3: memref<16x16xbf16, #tpu.memory_space<vmem>>, %arg4: memref<16x32xf32, #tpu.memory_space<vmem>>, %arg5: memref<1x32xf32, #tpu.memory_space<vmem>>, %arg6: memref<16x32xbf16, #tpu.memory_space<vmem>>, %arg7: memref<16x16xf32, #tpu.memory_space<vmem>>) attributes {dimension_semantics = [#tpu.dimension_semantics<parallel>, #tpu.dimension_semantics<arbitrary>], iteration_bounds = array<i64: 1, 1>, scalar_prefetch = 0 : i64, scratch_operands = 1 : i64, tpu.core_type = #tpu.core_type<tc>, window_params = [{transform_indices = @transform_0, window_bounds = array<i64: 16, 16>}, {transform_indices = @transform_1, window_bounds = array<i64: 16, 16>}, {pipeline_mode = #tpu.pipeline_mode<synchronous>, transform_indices = @transform_2, window_bounds = array<i64: 16, 32>}, {pipeline_mode = #tpu.pipeline_mode<synchronous>, transform_indices = @transform_3, window_bounds = array<i64: 1, 32>}, {transform_indices = @transform_4, window_bounds = array<i64: 16, 32>}]} {
    %c0_i32 = arith.constant 0 : i32
    %0 = arith.cmpi eq, %arg1, %c0_i32 : i32
    %1 = arith.extui %0 : i1 to i32
    %c0_i32_0 = arith.constant 0 : i32
    %2 = arith.cmpi ne, %1, %c0_i32_0 : i32
    scf.if %2 {
      %cst_10 = arith.constant 0.000000e+00 : f32
      %12 = vector.broadcast %cst_10 : f32 to vector<16x16xf32>
      %c0_11 = arith.constant 0 : index
      %c0_12 = arith.constant 0 : index
      %13 = vector.load %arg7[%c0_11, %c0_12] : memref<16x16xf32, #tpu.memory_space<vmem>>, vector<16x16xf32>
      tpu.vector_store %arg7[%c0_11, %c0_12], %12 {strides = array<i32>} : memref<16x16xf32, #tpu.memory_space<vmem>>, vector<16x16xf32>,
    } else {
    }
    %c0 = arith.constant 0 : index
    %c0_1 = arith.constant 0 : index
    %3 = vector.load %arg7[%c0, %c0_1] : memref<16x16xf32, #tpu.memory_space<vmem>>, vector<16x16xf32>
    %c0_2 = arith.constant 0 : index
    %c0_3 = arith.constant 0 : index
    %4 = vector.load %arg2[%c0_2, %c0_3] : memref<16x16xbf16, #tpu.memory_space<vmem>>, vector<16x16xbf16>
    %c0_4 = arith.constant 0 : index
    %c0_5 = arith.constant 0 : index
    %5 = vector.load %arg3[%c0_4, %c0_5] : memref<16x16xbf16, #tpu.memory_space<vmem>>, vector<16x16xbf16>
    %cst = arith.constant dense<0.000000e+00> : vector<16x16xf32>
    %6 = tpu.matmul %4, %5, %cst {dimension_numbers = #tpu.dot_dimension_numbers<[1], [0], [0], [1], [0, 0, 1, 1], [], []>} : vector<16x16xbf16>, vector<16x16xbf16>, vector<16x16xf32> -> vector<16x16xf32>
    %7 = arith.addf %3, %6 : vector<16x16xf32>
    %c0_6 = arith.constant 0 : index
    %c0_7 = arith.constant 0 : index
    %8 = vector.load %arg7[%c0_6, %c0_7] : memref<16x16xf32, #tpu.memory_space<vmem>>, vector<16x16xf32>
    tpu.vector_store %arg7[%c0_6, %c0_7], %7 {strides = array<i32>} : memref<16x16xf32, #tpu.memory_space<vmem>>, vector<16x16xf32>,
    %c0_i32_8 = arith.constant 0 : i32
    %9 = arith.cmpi eq, %arg1, %c0_i32_8 : i32
    %10 = arith.extui %9 : i1 to i32
    %c0_i32_9 = arith.constant 0 : i32
    %11 = arith.cmpi ne, %10, %c0_i32_9 : i32
    scf.if %11 {
      %c0_10 = arith.constant 0 : index
      %c0_11 = arith.constant 0 : index
      %12 = vector.load %arg7[%c0_10, %c0_11] : memref<16x16xf32, #tpu.memory_space<vmem>>, vector<16x16xf32>
      %c0_12 = arith.constant 0 : index
      %c0_13 = arith.constant 0 : index
      %13 = vector.load %arg4[%c0_12, %c0_13] : memref<16x32xf32, #tpu.memory_space<vmem>>, vector<16x32xf32>
      %cst_14 = arith.constant dense<0.000000e+00> : vector<16x32xf32>
      %14 = tpu.matmul %12, %13, %cst_14 {dimension_numbers = #tpu.dot_dimension_numbers<[1], [0], [0], [1], [0, 0, 1, 1], [], []>} : vector<16x16xf32>, vector<16x32xf32>, vector<16x32xf32> -> vector<16x32xf32>
      %c0_15 = arith.constant 0 : index
      %c0_16 = arith.constant 0 : index
      %15 = vector.load %arg5[%c0_15, %c0_16] : memref<1x32xf32, #tpu.memory_space<vmem>>, vector<1x32xf32>
      %16 = vector.broadcast %15 : vector<1x32xf32> to vector<16x32xf32>
      %17 = arith.addf %14, %16 : vector<16x32xf32>
      %cst_17 = arith.constant 0.000000e+00 : f32
      %18 = vector.broadcast %cst_17 : f32 to vector<16x32xf32>
      %19 = arith.maximumf %17, %18 : vector<16x32xf32>
      %20 = arith.truncf %19 : vector<16x32xf32> to vector<16x32xbf16>
      %c0_18 = arith.constant 0 : index
      %c0_19 = arith.constant 0 : index
      %21 = vector.load %arg6[%c0_18, %c0_19] : memref<16x32xbf16, #tpu.memory_space<vmem>>, vector<16x32xbf16>
      tpu.vector_store %arg6[%c0_18, %c0_19], %20 {strides = array<i32>} : memref<16x32xbf16, #tpu.memory_space<vmem>>, vector<16x32xbf16>,
    } else {
    }
    return
  }
  func.func @transform_0(%arg0: i32, %arg1: i32) -> (i32, i32) {
    %c0_i32 = arith.constant 0 : i32
    return %arg0, %arg1 : i32, i32
  }
  func.func @transform_1(%arg0: i32, %arg1: i32) -> (i32, i32) {
    %c0_i32 = arith.constant 0 : i32
    %c0_i32_0 = arith.constant 0 : i32
    return %arg1, %c0_i32 : i32, i32
  }
  func.func @transform_2(%arg0: i32, %arg1: i32) -> (i32, i32) {
    %c0_i32 = arith.constant 0 : i32
    %c0_i32_0 = arith.constant 0 : i32
    %c0_i32_1 = arith.constant 0 : i32
    return %c0_i32, %c0_i32_0 : i32, i32
  }
  func.func @transform_3(%arg0: i32, %arg1: i32) -> (i32, i32) {
    %c0_i32 = arith.constant 0 : i32
    %c0_i32_0 = arith.constant 0 : i32
    %c0_i32_1 = arith.constant 0 : i32
    return %c0_i32, %c0_i32_0 : i32, i32
  }
  func.func @transform_4(%arg0: i32, %arg1: i32) -> (i32, i32) {
    %c0_i32 = arith.constant 0 : i32
    %c0_i32_0 = arith.constant 0 : i32
    return %arg0, %c0_i32 : i32, i32
  }
}

</mosaic_0001>

<llo_original>
// kernel: tpu_custom_call.1
$region0: #{tpu_custom_call.1}
  #allocation0 [shape = 'u32[]', space=smem, size = 0x4, offset = 0x4, fixed_abs, tag = 'smem constant byte address 0x4 - core index']
  #allocation1 [shape = 'u32[144,128]{1,0:T(1,128)}', space=vmem, size = 0x12000, scoped, tag = 'internal scratch']
  #allocation2 [shape = 'f32[16,16]{1,0:T(8,128)}', space=vmem, size = 0x2000, scoped, tag = 'scratch operand']
  %s0 = inlined_call_operand.hbm [shape: bf16[16,16], index: 0, kind: input, shape index: {}]
  %s1 = inlined_call_operand.hbm [shape: bf16[16,16], index: 1, kind: input, shape index: {}]
  %s2 = inlined_call_operand.hbm [shape: f32[16,32], index: 2, kind: input, shape index: {}]
  %s3 = inlined_call_operand.vmem [shape: f32[1,32], index: 3, kind: input, shape index: {}]
  %s4 = inlined_call_operand.hbm [shape: bf16[16,32], index: 4, kind: output, shape index: {}]
  %s5 = sld [smem:[#allocation0]]
  $region46: #{tpu_custom_call.1} parent=0
    _
  %s7 = ssub.s32 1, %s5
  %s8 = scalar_select 0, %s7, %s5
  $region1: #{tpu_custom_call.1} parent=0
    #allocation3 [shape = 'u8[4096]{0}', space=vmem, size = 0x1000, scoped, tag = 'input window, operand 0, single buffered']
    #allocation4 [shape = 's32[1]{0}', space=sflag, size = 0x4, scoped, tag = 'scoped memory for tpu_custom_call.1']
    #allocation5 [shape = 's32[1]{0}', space=sflag, size = 0x4, scoped, tag = 'scoped memory for tpu_custom_call.1']
    #allocation6 [shape = 'u8[4096]{0}', space=vmem, size = 0x1000, scoped, tag = 'input window, operand 1, single buffered']
    #allocation7 [shape = 's32[1]{0}', space=sflag, size = 0x4, scoped, tag = 'scoped memory for tpu_custom_call.1']
    #allocation8 [shape = 'u8[8192]{0}', space=vmem, size = 0x2000, scoped, tag = 'input window, operand 2, single buffered']
    #allocation9 [shape = 'u8[4096]{0}', space=vmem, size = 0x1000, scoped, tag = 'output window, operand 0, single buffered']
    %9 = vsyncpa [#allocation4], 0
    %10 = vsyncpa [#allocation7], 0
    %11 = vsyncpa [#allocation5], 0
    // Predicated region
    $region2: #{tpu_custom_call.1} parent=1 // pred_check
      _
    $region3: #{tpu_custom_call.1} parent=1 // pred_check_branch
      %13 = sbr.rel (0) target = $region5
    $region4: #{tpu_custom_call.1} parent=1 // pred_region
      %s15 = ssub.s32 128, 128
      %16 = vsyncadd [#allocation4], %s15
      %s17 = sshll.u32 [#allocation3], 4
      %s18 = int_to_ptr.vmem [resolvable:$true] %s17
      %23 = dma.hbm_to_vmem [thread:$0]  %s0, 128, %s18, [#allocation4], 64, 64, 4
    $region5: #{tpu_custom_call.1} parent=1 // pred_fallthru
      _
    // Predicated region
    $region6: #{tpu_custom_call.1} parent=1 // pred_check
      _
    $region7: #{tpu_custom_call.1} parent=1 // pred_check_branch
      %25 = sbr.rel (0) target = $region9
    $region8: #{tpu_custom_call.1} parent=1 // pred_region
      %s27 = ssub.s32 128, 128
      %28 = vsyncadd [#allocation7], %s27
      %s29 = sshll.u32 [#allocation6], 4
      %s30 = int_to_ptr.vmem [resolvable:$true] %s29
      %35 = dma.hbm_to_vmem [thread:$0]  %s1, 128, %s30, [#allocation7], 64, 64, 4
    $region9: #{tpu_custom_call.1} parent=1 // pred_fallthru
      _
    // Predicated region
    $region10: #{tpu_custom_call.1} parent=1 // pred_check
      _
    $region11: #{tpu_custom_call.1} parent=1 // pred_check_branch
      %37 = sbr.rel (0) target = $region13
    $region12: #{tpu_custom_call.1} parent=1 // pred_region
      %s39 = ssub.s32 256, 256
      %40 = vsyncadd [#allocation7], %s39
      %s41 = sshll.u32 [#allocation8], 4
      %s42 = int_to_ptr.vmem [resolvable:$true] %s41
      %47 = dma.hbm_to_vmem [thread:$0]  %s2, 256, %s42, [#allocation7], 128, 128, 8
    $region13: #{tpu_custom_call.1} parent=1 // pred_fallthru
      _
    // Predicated region
    $region14: #{tpu_custom_call.1} parent=1 // pred_check
      _
    $region15: #{tpu_custom_call.1} parent=1 // pred_check_branch
      %49 = sbr.rel (0) target = $region17
    $region16: #{tpu_custom_call.1} parent=1 // pred_region
      _
    $region17: #{tpu_custom_call.1} parent=1 // pred_fallthru
      _
    // Predicated region
    $region18: #{tpu_custom_call.1} parent=1 // pred_check
      _
    $region19: #{tpu_custom_call.1} parent=1 // pred_check_branch
      %51 = sbr.rel (0) target = $region21
    $region20: #{tpu_custom_call.1} parent=1 // pred_region
      %52 = dma.done [#allocation4], 128
    $region21: #{tpu_custom_call.1} parent=1 // pred_fallthru
      _
    // Predicated region
    $region22: #{tpu_custom_call.1} parent=1 // pred_check
      _
    $region23: #{tpu_custom_call.1} parent=1 // pred_check_branch
      %54 = sbr.rel (0) target = $region25
    $region24: #{tpu_custom_call.1} parent=1 // pred_region
      %55 = dma.done [#allocation7], 128
    $region25: #{tpu_custom_call.1} parent=1 // pred_fallthru
      _
    // Predicated region
    $region26: #{tpu_custom_call.1} parent=1 // pred_check
      _
    $region27: #{tpu_custom_call.1} parent=1 // pred_check_branch
      %57 = sbr.rel (0) target = $region29
    $region28: #{tpu_custom_call.1} parent=1 // pred_region
      %58 = dma.done [#allocation7], 256
    $region29: #{tpu_custom_call.1} parent=1 // pred_fallthru
      _
    %p60 = scmp.eq.s32.totalorder 0, 0
    // Predicated region
    $region30: #{tpu_custom_call.1} parent=1 // pred_check
      %p61 = pneg %p60
    $region31: #{tpu_custom_call.1} parent=1 // pred_check_branch
      %63 = sbr.rel (%p61) target = $region33
    $region32: #{tpu_custom_call.1} parent=1 // pred_region
      %vm64 = vcmask 130048
      %65 = vst.msk [vmem:[#allocation2] sm:$0xff] %vm64, 0.0
      %66 = vst.msk [vmem:[#allocation2 + $0x8] sm:$0xff] %vm64, 0.0
    $region33: #{tpu_custom_call.1} parent=1 // pred_fallthru
      _
    %v67 = vld [vmem:[#allocation2] sm:$0xff]
    %v68 = vld [vmem:[#allocation2 + $0x8] sm:$0xff]
    %v69 = vld [vmem:[#allocation3] sm:$0xf]
    %v70 = vld [vmem:[#allocation3 + $0x4] sm:$0xf]
    %v71 = vld [vmem:[#allocation6] sm:$0xf]
    %v72 = vld [vmem:[#allocation6 + $0x4] sm:$0xf]
    %v75 = vunpack.c.l.b16 %v69
    %v76 = vunpack.c.l.b16 %v70
    %v77 = vpack.c.b16 %v76, %v75
    %v80 = vunpack.c.l.b16 %v71
    %v81 = vunpack.c.l.b16 %v72
    %v82 = vpack.c.b16 %v81, %v80
    %vm84 = vcmask 130048
    %v86 = vsel %vm84, %v77, 0
    %88 = vmatprep.subr.bf16.mxu0 0
    %89 = vmatpush1.bf16.msra.mxu0 %v82
    %90 = vmatprep.subr.bf16.mxu0 0
    %91 = vmatpush1.bf16.msra.mxu0 0
    %92 = vmatprep.subr.bf16.mxu0 0
    %93 = vmatpush1.bf16.msra.mxu0 0
    %94 = vmatprep.subr.bf16.mxu0 0
    %95 = vmatpush1.bf16.msra.mxu0 0
    %96 = vmatprep.subr.bf16.mxu0 0
    %97 = vmatpush1.bf16.msra.mxu0 0
    %98 = vmatprep.subr.bf16.mxu0 0
    %99 = vmatpush1.bf16.msra.mxu0 0
    %100 = vmatprep.subr.bf16.mxu0 0
    %101 = vmatpush1.bf16.msra.mxu0 0
    %102 = vmatprep.subr.bf16.mxu0 0
    %103 = vmatpush1.bf16.msra.mxu0 0
    %104 = vmatprep.subr.bf16.mxu0 0
    %105 = vmatpush1.bf16.msra.mxu0 0
    %106 = vmatprep.subr.bf16.mxu0 0
    %107 = vmatpush1.bf16.msra.mxu0 0
    %108 = vmatprep.subr.bf16.mxu0 0
    %109 = vmatpush1.bf16.msra.mxu0 0
    %110 = vmatprep.subr.bf16.mxu0 0
    %111 = vmatpush1.bf16.msra.mxu0 0
    %112 = vmatprep.subr.bf16.mxu0 0
    %113 = vmatpush1.bf16.msra.mxu0 0
    %114 = vmatprep.subr.bf16.mxu0 0
    %115 = vmatpush1.bf16.msra.mxu0 0
    %116 = vmatprep.subr.bf16.mxu0 0
    %117 = vmatpush1.bf16.msra.mxu0 0
    %118 = vmatprep.subr.bf16.mxu0 0
    %119 = vmatpush1.bf16.msra.mxu0 0
    %120 = vmatprep.mubr.bf16.mxu0 0
    %121 = vmatmul.mubr.bf16.gmra.mrb[0].mxu0 %v86
    %v122 = vpop.f32.mrb[0].mxu0
    %v123 = vadd.f32 0.0, %v122
    %v124 = vpop.f32.mrb[0].mxu0
    %v125 = vpop.f32.mrb[0].mxu0
    %v126 = vadd.f32 0.0, %v125
    %v127 = vpop.f32.mrb[0].mxu0
    %128 = vdwg.mxu0
    %v129 = vadd.f32 %v67, %v123
    %v130 = vadd.f32 %v68, %v126
    %131 = vst.msk [vmem:[#allocation2] sm:$0xff] %vm84, %v129
    %132 = vst.msk [vmem:[#allocation2 + $0x8] sm:$0xff] %vm84, %v130
    // Predicated region
    $region34: #{tpu_custom_call.1} parent=1 // pred_check
      %p133 = pneg %p60
    $region35: #{tpu_custom_call.1} parent=1 // pred_check_branch
      %135 = sbr.rel (%p133) target = $region37
    $region36: #{tpu_custom_call.1} parent=1 // pred_region
      %v136 = vld [vmem:[#allocation2] sm:$0xff]
      %v137 = vld [vmem:[#allocation2 + $0x8] sm:$0xff]
      %v138 = vld [vmem:[#allocation8] sm:$0xff]
      %v139 = vld [vmem:[#allocation8 + $0x8] sm:$0xff]
      %v140 = vld [vmem:[%s3] sm:$0x1]
      %v142 = vlaneseq
      %v143 = vshrl.u32 %v142, 7
      %v144 = vsub.s32 0, %v143
      %v145 = vrot.slane %v140, %v144
      %v148 = vsel %vm84, %v136, 0
      %v151 = vsel %vm84, %v137, 0
      %153 = vmatprep.subr.mxu0 0.0
      %154 = vmatpush1.msra.mxu0 %v138
      %155 = vmatprep.subr.mxu0 0.0
      %156 = vmatpush1.msra.mxu0 %v139
      %157 = vmatprep.subr.mxu0 0.0
      %158 = vmatpush1.msra.mxu0 0.0
      %159 = vmatprep.subr.mxu0 0.0
      %160 = vmatpush1.msra.mxu0 0.0
      %161 = vmatprep.subr.mxu0 0.0
      %162 = vmatpush1.msra.mxu0 0.0
      %163 = vmatprep.subr.mxu0 0.0
      %164 = vmatpush1.msra.mxu0 0.0
      %165 = vmatprep.subr.mxu0 0.0
      %166 = vmatpush1.msra.mxu0 0.0
      %167 = vmatprep.subr.mxu0 0.0
      %168 = vmatpush1.msra.mxu0 0.0
      %169 = vmatprep.subr.mxu0 0.0
      %170 = vmatpush1.msra.mxu0 0.0
      %171 = vmatprep.subr.mxu0 0.0
      %172 = vmatpush1.msra.mxu0 0.0
      %173 = vmatprep.subr.mxu0 0.0
      %174 = vmatpush1.msra.mxu0 0.0
      %175 = vmatprep.subr.mxu0 0.0
      %176 = vmatpush1.msra.mxu0 0.0
      %177 = vmatprep.subr.mxu0 0.0
      %178 = vmatpush1.msra.mxu0 0.0
      %179 = vmatprep.subr.mxu0 0.0
      %180 = vmatpush1.msra.mxu0 0.0
      %181 = vmatprep.subr.mxu0 0.0
      %182 = vmatpush1.msra.mxu0 0.0
      %183 = vmatprep.subr.mxu0 0.0
      %184 = vmatpush1.msra.mxu0 0.0
      %185 = vmatprep.subr.mxu0 0.0
      %186 = vmatpush1.msra.mxu0 0.0
      %187 = vmatprep.subr.mxu0 0.0
      %188 = vmatpush1.msra.mxu0 0.0
      %189 = vmatprep.subr.mxu0 0.0
      %190 = vmatpush1.msra.mxu0 0.0
      %191 = vmatprep.subr.mxu0 0.0
      %192 = vmatpush1.msra.mxu0 0.0
      %193 = vmatprep.subr.mxu0 0.0
      %194 = vmatpush1.msra.mxu0 0.0
      %195 = vmatprep.subr.mxu0 0.0
      %196 = vmatpush1.msra.mxu0 0.0
      %197 = vmatprep.subr.mxu0 0.0
      %198 = vmatpush1.msra.mxu0 0.0
      %199 = vmatprep.subr.mxu0 0.0
      %200 = vmatpush1.msra.mxu0 0.0
      %201 = vmatprep.subr.mxu0 0.0
      %202 = vmatpush1.msra.mxu0 0.0
      %203 = vmatprep.subr.mxu0 0.0
      %204 = vmatpush1.msra.mxu0 0.0
      %205 = vmatprep.subr.mxu0 0.0
      %206 = vmatpush1.msra.mxu0 0.0
      %207 = vmatprep.subr.mxu0 0.0
      %208 = vmatpush1.msra.mxu0 0.0
      %209 = vmatprep.subr.mxu0 0.0
      %210 = vmatpush1.msra.mxu0 0.0
      %211 = vmatprep.subr.mxu0 0.0
      %212 = vmatpush1.msra.mxu0 0.0
      %213 = vmatprep.subr.mxu0 0.0
      %214 = vmatpush1.msra.mxu0 0.0
      %215 = vmatprep.subr.mxu0 0.0
      %216 = vmatpush1.msra.mxu0 0.0
      %217 = vmatprep.mubr.f32.mxu0 0.0
      %218 = vmatmul.mubr.f32.gmra.mrb[0].mxu0 %v148
      %v219 = vpop.f32.mrb[0].mxu0
      %v220 = vadd.f32 %v145, %v219
      %v221 = vpop.f32.mrb[0].mxu0
      %222 = vmatprep.mubr.f32.mxu0 0.0
      %223 = vmatmul.mubr.f32.gmra.mrb[0].mxu0 %v151
      %v224 = vpop.f32.mrb[0].mxu0
      %v225 = vadd.f32 %v145, %v224
      %v226 = vpop.f32.mrb[0].mxu0
      %227 = vdwg.mxu0
      %v228 = vmax.f32 %v220, 0.0
      %v229 = vmax.f32 %v225, 0.0
      %v230 = vpack.c.bf16 %v229, %v228
      %v232 = vunpack.c.l.b16 %v230
      %v233 = vunpack.c.h.b16 %v230
      %v234 = vpack.c.b16 %v232, %v232
      %v235 = vpack.c.b16 %v233, %v233
      %vm238 = vcmask 257024
      %239 = vst.msk [vmem:[#allocation9] sm:$0xf] %vm238, %v234
      %240 = vst.msk [vmem:[#allocation9 + $0x4] sm:$0xf] %vm238, %v235
    $region37: #{tpu_custom_call.1} parent=1 // pred_fallthru
      _
    // Predicated region
    $region38: #{tpu_custom_call.1} parent=1 // pred_check
      _
    $region39: #{tpu_custom_call.1} parent=1 // pred_check_branch
      %242 = sbr.rel (0) target = $region41
    $region40: #{tpu_custom_call.1} parent=1 // pred_region
      %s244 = ssub.s32 128, 128
      %245 = vsyncadd [#allocation5], %s244
      %s246 = sshll.u32 [#allocation9], 4
      %s247 = int_to_ptr.vmem [resolvable:$true] %s246
      %252 = dma.vmem_to_hbm [thread:$0]  %s247, 128, %s4, [#allocation5], 64, 64, 4
    $region41: #{tpu_custom_call.1} parent=1 // pred_fallthru
      _
    // Predicated region
    $region42: #{tpu_custom_call.1} parent=1 // pred_check
      _
    $region43: #{tpu_custom_call.1} parent=1 // pred_check_branch
      %254 = sbr.rel (0) target = $region45
    $region44: #{tpu_custom_call.1} parent=1 // pred_region
      %255 = dma.done [#allocation5], 128
    $region45: #{tpu_custom_call.1} parent=1 // pred_fallthru
      _
    %256 = vsyncpa [#allocation4], 1
    %257 = vsyncpa [#allocation7], 1
    %258 = vsyncpa [#allocation5], 1

</llo_original>
